<compile_context>
chip_gen: v7x
topology: tpu7x:2x2x1
jax: 0.10.0
libtpu: 0.0.40
codegen_flags: <defaults>
</compile_context>

<pallas_src>
import math
import numpy as np
import jax
import jax.numpy as jnp
from jax.experimental import pallas as pl
from jax.experimental.pallas import tpu as pltpu


def _round_up(x, m):
    return ((x + m - 1) // m) * m


# ----------------------------------------------------------------------------
# Deterministic parameter initialization (mirrors init_sparse_params /
# sample_erdos_renyi from layers.py, numpy RNG instead of torch RNG).
# ----------------------------------------------------------------------------
def sample_erdos_renyi_np(rng, in_features, out_features, num_edges):
    edges = np.empty((2, 0), dtype=np.int64)
    while edges.shape[1] < num_edges:
        remaining = num_edges - edges.shape[1]
        from_nodes = rng.integers(0, in_features, size=(remaining,))
        to_nodes = rng.integers(0, out_features, size=(remaining,))
        edge_samples = np.stack((to_nodes, from_nodes), axis=0)
        edges = np.concatenate((edges, edge_samples), axis=1)
        edges = np.unique(edges, axis=1)  # sorted, unique columns
    return edges


def init_sparse_params_np(in_features, out_features, sparsity, bias=True, seed=0):
    """Returns (w_t_dense [K, N] float32, bias [N] float32 or None).

    The densified weight is stored already transposed ([in, out] = W^T) so the
    forward pass never transposes at runtime.
    """
    rng = np.random.default_rng(seed)
    num_edges = math.ceil(in_features * out_features * (1.0 - sparsity))
    edges = sample_erdos_renyi_np(rng, in_features, out_features, num_edges)

    row_count = np.bincount(edges[0], minlength=out_features)  # fan-in / output
    fan_in = row_count.astype(np.float64)
    bound = math.sqrt(3.0) / np.sqrt(np.clip(fan_in, 1.0, None))

    weights = rng.uniform(-1.0, 1.0, size=(num_edges,)) * bound[edges[0]]

    w_t = np.zeros((in_features, out_features), dtype=np.float32)  # [K, N]
    w_t[edges[1], edges[0]] = weights.astype(np.float32)

    if bias:
        b = (rng.uniform(-1.0, 1.0, size=(out_features,)) * bound).astype(np.float32)
    else:
        b = None
    return w_t, b


# ----------------------------------------------------------------------------
# Parameter preparation: pad to lane-dense tile multiples, cast weight to the
# MXU compute dtype, build the per-(N-tile, K-tile) block occupancy mask.
# ----------------------------------------------------------------------------
def prepare_sparse_linear_params(w_t_dense, bias, *, tn=512, tk=512,
                                 compute_dtype=jnp.bfloat16):
    K, N = w_t_dense.shape
    tn = min(tn, _round_up(N, 128))
    tk = min(tk, _round_up(K, 128))
    Kp = _round_up(K, tk)
    Np = _round_up(N, tn)

    wt_pad = np.zeros((Kp, Np), dtype=np.float32)
    wt_pad[:K, :N] = w_t_dense                       # zero padding contributes nothing

    b = np.zeros((N,), np.float32) if bias is None else np.asarray(bias, np.float32)
    b_pad = np.zeros((1, Np), dtype=np.float32)
    b_pad[0, :N] = b

    n_j, n_k = Np // tn, Kp // tk
    block_mask = np.zeros((n_j, n_k), dtype=np.int32)   # [N tiles, K tiles]
    for j in range(n_j):
        for k in range(n_k):
            blk = wt_pad[k * tk:(k + 1) * tk, j * tn:(j + 1) * tn]
            block_mask[j, k] = 1 if np.any(blk != 0.0) else 0

    return dict(
        wt=jnp.asarray(wt_pad, dtype=compute_dtype),   # [Kp, Np] bf16 (MXU fast path)
        bias=jnp.asarray(b_pad, dtype=jnp.float32),    # [1, Np] f32 epilogue add
        block_mask=jnp.asarray(block_mask),            # [n_j, n_k] int32 (SMEM prefetch)
        in_features=K, out_features=N,
        tn=tn, tk=tk, compute_dtype=compute_dtype,
    )


# ----------------------------------------------------------------------------
# Pallas kernel: tiled y = x @ W^T + bias with f32 accumulator and
# block-sparse skipping of all-zero weight tiles.
# ----------------------------------------------------------------------------
def sparse_linear_kernel(mask_ref, x_ref, wt_ref, b_ref, o_ref, acc_ref):
    j = pl.program_id(1)          # N tile index
    k = pl.program_id(2)          # K (reduction) tile index

    @pl.when(k == 0)
    def _():
        acc_ref[...] = jnp.zeros_like(acc_ref)

    # Skip MXU work for weight tiles that are entirely zero (structural
    # sparsity of the Erdos-Renyi pattern / any zeroed block).
    @pl.when(mask_ref[j, k] != 0)
    def _():
        acc_ref[...] += jnp.dot(x_ref[...], wt_ref[...],
                                preferred_element_type=jnp.float32)

    @pl.when(k == pl.num_programs(2) - 1)
    def _():
        o_ref[...] = (acc_ref[...] + b_ref[...]).astype(o_ref.dtype)


def sparse_linear_forward(x, params, *, tm=256):
    """x: [B, K] float32 -> [B, N] float32 (== x @ W_dense.T + bias)."""
    B, K = x.shape
    assert K == params["in_features"]
    N = params["out_features"]
    wt = params["wt"]
    b2 = params["bias"]
    mask = params["block_mask"]
    tn, tk = params["tn"], params["tk"]
    cdtype = params["compute_dtype"]

    Kp, Np = wt.shape
    tm = min(tm, _round_up(B, 8))
    Mp = _round_up(B, tm)

    xp = jnp.pad(x.astype(cdtype), ((0, Mp - B), (0, Kp - K)))

    grid = (Mp // tm, Np // tn, Kp // tk)

    flops = 2 * Mp * Np * Kp
    bytes_accessed = int(xp.size * xp.dtype.itemsize
                         + wt.size * wt.dtype.itemsize
                         + b2.size * 4 + Mp * Np * 4)

    out_p = pl.pallas_call(
        sparse_linear_kernel,
        out_shape=jax.ShapeDtypeStruct((Mp, Np), jnp.float32),
        grid_spec=pltpu.PrefetchScalarGridSpec(
            num_scalar_prefetch=1,                      # block occupancy mask -> SMEM
            grid=grid,
            in_specs=[
                pl.BlockSpec((tm, tk), lambda i, j, k, m: (i, k)),   # x tile
                pl.BlockSpec((tk, tn), lambda i, j, k, m: (k, j)),   # W^T tile
                pl.BlockSpec((1, tn), lambda i, j, k, m: (0, j)),    # bias tile
            ],
            out_specs=pl.BlockSpec((tm, tn), lambda i, j, k, m: (i, j)),
            scratch_shapes=[pltpu.VMEM((tm, tn), jnp.float32)],      # f32 accumulator
        ),
        compiler_params=pltpu.CompilerParams(
            dimension_semantics=("parallel", "parallel", "arbitrary")),
        cost_estimate=pl.CostEstimate(flops=flops, transcendentals=0,
                                      bytes_accessed=bytes_accessed),
    )(mask, xp, wt, b2)

    return out_p[:B, :N].astype(x.dtype)


# ----------------------------------------------------------------------------
if __name__ == "__main__":
    # ---- Case 1: original demo shapes (single-tile grid) -------------------
    in_features, out_features, sparsity, batch = 32, 16, 0.75, 8
    w_t, bias = init_sparse_params_np(in_features, out_features, sparsity,
                                      bias=True, seed=0)
    params = prepare_sparse_linear_params(w_t, bias)

    x = jax.random.normal(jax.random.PRNGKey(0), (batch, in_features),
                          dtype=jnp.float32)
    out = jax.block_until_ready(sparse_linear_forward(x, params))

    # bf16-precision JAX reference (same rounding as the kernel's MXU path)
    ref_bf16 = (jnp.dot(x.astype(jnp.bfloat16),
                        jnp.asarray(w_t).astype(jnp.bfloat16),
                        preferred_element_type=jnp.float32)
                + jnp.asarray(bias)[None, :])
    np.testing.assert_allclose(np.asarray(out), np.asarray(ref_bf16),
                               rtol=1e-4, atol=1e-4)
    # fp32 reference (matches the torch.sparse.addmm forward, loose tol for bf16)
    ref_f32 = x @ jnp.asarray(w_t) + jnp.asarray(bias)[None, :]
    np.testing.assert_allclose(np.asarray(out), np.asarray(ref_f32),
                               rtol=5e-2, atol=5e-2)

    # ---- Case 2: multi-tile grid + exercised block-mask skip path ----------
    in2, out2, batch2 = 300, 200, 20
    w_t2, bias2 = init_sparse_params_np(in2, out2, 0.9, bias=True, seed=1)
    # Structured sparsity: zero a whole K-tile so its occupancy-mask column is
    # 0 and the kernel skips those MXU steps.
    w_t2[128:256, :] = 0.0
    params2 = prepare_sparse_linear_params(w_t2, bias2, tn=128, tk=128)

    x2 = jax.random.normal(jax.random.PRNGKey(1), (batch2, in2),
                           dtype=jnp.float32)
    out2_v = jax.block_until_ready(sparse_linear_forward(x2, params2))

    ref2_bf16 = (jnp.dot(x2.astype(jnp.bfloat16),
                         jnp.asarray(w_t2).astype(jnp.bfloat16),
                         preferred_element_type=jnp.float32)
                 + jnp.asarray(bias2)[None, :])
    np.testing.assert_allclose(np.asarray(out2_v), np.asarray(ref2_bf16),
                               rtol=1e-4, atol=1e-4)
    ref2_f32 = x2 @ jnp.asarray(w_t2) + jnp.asarray(bias2)[None, :]
    np.testing.assert_allclose(np.asarray(out2_v), np.asarray(ref2_f32),
                               rtol=5e-2, atol=5e-2)

    print("KERNEL_OK")
</pallas_src>

<mosaic_0001>
module attributes {stable_mosaic.version = 11 : i64} {
  func.func @sparse_linear_kernel(%arg0: i32, %arg1: i32, %arg2: i32, %arg3: memref<1x1xi32, #tpu.memory_space<smem>>, %arg4: memref<8x128xbf16, #tpu.memory_space<vmem>>, %arg5: memref<128x128xbf16, #tpu.memory_space<vmem>>, %arg6: memref<1x128xf32, #tpu.memory_space<vmem>>, %arg7: memref<8x128xf32, #tpu.memory_space<vmem>>, %arg8: memref<8x128xf32, #tpu.memory_space<vmem>>) attributes {dimension_semantics = [#tpu.dimension_semantics<parallel>, #tpu.dimension_semantics<parallel>, #tpu.dimension_semantics<arbitrary>], iteration_bounds = array<i64: 1, 1, 1>, scalar_prefetch = 1 : i64, scratch_operands = 1 : i64, tpu.core_type = #tpu.core_type<tc>, window_params = [{transform_indices = @transform_0, window_bounds = array<i64: 8, 128>}, {transform_indices = @transform_1, window_bounds = array<i64: 128, 128>}, {transform_indices = @transform_2, window_bounds = array<i64: 1, 128>}, {transform_indices = @transform_3, window_bounds = array<i64: 8, 128>}]} {
    %c0_i32 = arith.constant 0 : i32
    %0 = arith.cmpi eq, %arg2, %c0_i32 : i32
    %1 = arith.extui %0 : i1 to i32
    %c0_i32_0 = arith.constant 0 : i32
    %2 = arith.cmpi ne, %1, %c0_i32_0 : i32
    scf.if %2 {
      %cst = arith.constant 0.000000e+00 : f32
      %12 = vector.broadcast %cst : f32 to vector<8x128xf32>
      %c0 = arith.constant 0 : index
      %c0_5 = arith.constant 0 : index
      %13 = vector.load %arg8[%c0, %c0_5] : memref<8x128xf32, #tpu.memory_space<vmem>>, vector<8x128xf32>
      tpu.vector_store %arg8[%c0, %c0_5], %12 {strides = array<i32>} : memref<8x128xf32, #tpu.memory_space<vmem>>, vector<8x128xf32>,
    } else {
    }
    %3 = arith.index_cast %arg1 : i32 to index
    %4 = arith.index_cast %arg2 : i32 to index
    %5 = memref.load %arg3[%3, %4] : memref<1x1xi32, #tpu.memory_space<smem>>
    %c0_i32_1 = arith.constant 0 : i32
    %6 = arith.cmpi ne, %5, %c0_i32_1 : i32
    %7 = arith.extui %6 : i1 to i32
    %c0_i32_2 = arith.constant 0 : i32
    %8 = arith.cmpi ne, %7, %c0_i32_2 : i32
    scf.if %8 {
      %c0 = arith.constant 0 : index
      %c0_5 = arith.constant 0 : index
      %12 = vector.load %arg8[%c0, %c0_5] : memref<8x128xf32, #tpu.memory_space<vmem>>, vector<8x128xf32>
      %c0_6 = arith.constant 0 : index
      %c0_7 = arith.constant 0 : index
      %13 = vector.load %arg4[%c0_6, %c0_7] : memref<8x128xbf16, #tpu.memory_space<vmem>>, vector<8x128xbf16>
      %c0_8 = arith.constant 0 : index
      %c0_9 = arith.constant 0 : index
      %14 = vector.load %arg5[%c0_8, %c0_9] : memref<128x128xbf16, #tpu.memory_space<vmem>>, vector<128x128xbf16>
      %cst = arith.constant dense<0.000000e+00> : vector<8x128xf32>
      %15 = tpu.matmul %13, %14, %cst {dimension_numbers = #tpu.dot_dimension_numbers<[1], [0], [0], [1], [0, 0, 1, 1], [], []>} : vector<8x128xbf16>, vector<128x128xbf16>, vector<8x128xf32> -> vector<8x128xf32>
      %16 = arith.addf %12, %15 : vector<8x128xf32>
      %c0_10 = arith.constant 0 : index
      %c0_11 = arith.constant 0 : index
      %17 = vector.load %arg8[%c0_10, %c0_11] : memref<8x128xf32, #tpu.memory_space<vmem>>, vector<8x128xf32>
      tpu.vector_store %arg8[%c0_10, %c0_11], %16 {strides = array<i32>} : memref<8x128xf32, #tpu.memory_space<vmem>>, vector<8x128xf32>,
    } else {
    }
    %c0_i32_3 = arith.constant 0 : i32
    %9 = arith.cmpi eq, %arg2, %c0_i32_3 : i32
    %10 = arith.extui %9 : i1 to i32
    %c0_i32_4 = arith.constant 0 : i32
    %11 = arith.cmpi ne, %10, %c0_i32_4 : i32
    scf.if %11 {
      %c0 = arith.constant 0 : index
      %c0_5 = arith.constant 0 : index
      %12 = vector.load %arg8[%c0, %c0_5] : memref<8x128xf32, #tpu.memory_space<vmem>>, vector<8x128xf32>
      %c0_6 = arith.constant 0 : index
      %c0_7 = arith.constant 0 : index
      %13 = vector.load %arg6[%c0_6, %c0_7] : memref<1x128xf32, #tpu.memory_space<vmem>>, vector<1x128xf32>
      %14 = vector.broadcast %13 : vector<1x128xf32> to vector<8x128xf32>
      %15 = arith.addf %12, %14 : vector<8x128xf32>
      %c0_8 = arith.constant 0 : index
      %c0_9 = arith.constant 0 : index
      %16 = vector.load %arg7[%c0_8, %c0_9] : memref<8x128xf32, #tpu.memory_space<vmem>>, vector<8x128xf32>
      tpu.vector_store %arg7[%c0_8, %c0_9], %15 {strides = array<i32>} : memref<8x128xf32, #tpu.memory_space<vmem>>, vector<8x128xf32>,
    } else {
    }
    return
  }
  func.func @transform_0(%arg0: i32, %arg1: i32, %arg2: i32, %arg3: memref<1x1xi32, #tpu.memory_space<smem>>) -> (i32, i32) {
    %c0_i32 = arith.constant 0 : i32
    return %arg0, %arg2 : i32, i32
  }
  func.func @transform_1(%arg0: i32, %arg1: i32, %arg2: i32, %arg3: memref<1x1xi32, #tpu.memory_space<smem>>) -> (i32, i32) {
    %c0_i32 = arith.constant 0 : i32
    return %arg2, %arg1 : i32, i32
  }
  func.func @transform_2(%arg0: i32, %arg1: i32, %arg2: i32, %arg3: memref<1x1xi32, #tpu.memory_space<smem>>) -> (i32, i32) {
    %c0_i32 = arith.constant 0 : i32
    %c0_i32_0 = arith.constant 0 : i32
    return %c0_i32, %arg1 : i32, i32
  }
  func.func @transform_3(%arg0: i32, %arg1: i32, %arg2: i32, %arg3: memref<1x1xi32, #tpu.memory_space<smem>>) -> (i32, i32) {
    %c0_i32 = arith.constant 0 : i32
    return %arg0, %arg1 : i32, i32
  }
}

</mosaic_0001>

<llo_original>
// kernel: tpu_custom_call.1
$region0: #{tpu_custom_call.1}
  #allocation0 [shape = 'u32[]', space=smem, size = 0x4, offset = 0x4, fixed_abs, tag = 'smem constant byte address 0x4 - core index']
  #allocation1 [shape = 'u32[144,128]{1,0:T(1,128)}', space=vmem, size = 0x12000, scoped, tag = 'internal scratch']
  #allocation2 [shape = 'f32[8,128]{1,0:T(8,128)}', space=vmem, size = 0x1000, scoped, tag = 'scratch operand']
  #allocation3 [shape = 's32[1]{0}', space=sflag, size = 0x4, scoped, tag = 'scoped memory for tpu_custom_call.1']
  #allocation4 [shape = 's32[1,1]{1,0:T(1,128)S(6)}', space=smem, size = 0x200, scoped, tag = 'prefetched SMEM operand 0']
  %s0 = inlined_call_operand.<no memory space> [shape: s32[1,1], index: 0, kind: input, shape index: {}]
  %s1 = inlined_call_operand.hbm [shape: bf16[8,128], index: 1, kind: input, shape index: {}]
  %s2 = inlined_call_operand.hbm [shape: bf16[128,128], index: 2, kind: input, shape index: {}]
  %s3 = inlined_call_operand.vmem [shape: f32[1,128], index: 3, kind: input, shape index: {}]
  %s4 = inlined_call_operand.hbm [shape: f32[8,128], index: 4, kind: output, shape index: {}]
  %s5 = sld [smem:[#allocation0]]
  $region42: #{tpu_custom_call.1} parent=0
    _
  %s7 = ssub.s32 1, %s5
  %s8 = scalar_select 0, %s7, %s5
  %9 = sst [smem:[#allocation4]] %s0
  $region1: #{tpu_custom_call.1} parent=0
    #allocation5 [shape = 'u8[2048]{0}', space=vmem, size = 0x800, scoped, tag = 'input window, operand 1, single buffered']
    #allocation6 [shape = 's32[1]{0}', space=sflag, size = 0x4, scoped, tag = 'scoped memory for tpu_custom_call.1']
    #allocation7 [shape = 's32[1]{0}', space=sflag, size = 0x4, scoped, tag = 'scoped memory for tpu_custom_call.1']
    #allocation8 [shape = 'u8[32768]{0}', space=vmem, size = 0x8000, scoped, tag = 'input window, operand 2, single buffered']
    #allocation9 [shape = 's32[1]{0}', space=sflag, size = 0x4, scoped, tag = 'scoped memory for tpu_custom_call.1']
    #allocation10 [shape = 'u8[4096]{0}', space=vmem, size = 0x1000, scoped, tag = 'output window, operand 0, single buffered']
    %10 = vsyncpa [#allocation6], 0
    %11 = vsyncpa [#allocation9], 0
    %12 = vsyncpa [#allocation7], 0
    // Predicated region
    $region2: #{tpu_custom_call.1} parent=1 // pred_check
      _
    $region3: #{tpu_custom_call.1} parent=1 // pred_check_branch
      %14 = sbr.rel (0) target = $region5
    $region4: #{tpu_custom_call.1} parent=1 // pred_region
      %s16 = ssub.s32 64, 64
      %17 = vsyncadd [#allocation6], %s16
      %s19 = sshll.u32 [#allocation5], 4
      %s20 = int_to_ptr.vmem [resolvable:$true] %s19
      %22 = dma.hbm_to_vmem [thread:$0]  %s1, 64, %s20, [#allocation6]
    $region5: #{tpu_custom_call.1} parent=1 // pred_fallthru
      _
    // Predicated region
    $region6: #{tpu_custom_call.1} parent=1 // pred_check
      _
    $region7: #{tpu_custom_call.1} parent=1 // pred_check_branch
      %24 = sbr.rel (0) target = $region9
    $region8: #{tpu_custom_call.1} parent=1 // pred_region
      %s26 = ssub.s32 1024, 1024
      %27 = vsyncadd [#allocation9], %s26
      %s28 = sshll.u32 [#allocation8], 4
      %s29 = int_to_ptr.vmem [resolvable:$true] %s28
      %34 = dma.hbm_to_vmem [thread:$0]  %s2, 1024, %s29, [#allocation9], 64, 64, 4
    $region9: #{tpu_custom_call.1} parent=1 // pred_fallthru
      _
    // Predicated region
    $region10: #{tpu_custom_call.1} parent=1 // pred_check
      _
    $region11: #{tpu_custom_call.1} parent=1 // pred_check_branch
      %36 = sbr.rel (0) target = $region13
    $region12: #{tpu_custom_call.1} parent=1 // pred_region
      _
    $region13: #{tpu_custom_call.1} parent=1 // pred_fallthru
      _
    // Predicated region
    $region14: #{tpu_custom_call.1} parent=1 // pred_check
      _
    $region15: #{tpu_custom_call.1} parent=1 // pred_check_branch
      %38 = sbr.rel (0) target = $region17
    $region16: #{tpu_custom_call.1} parent=1 // pred_region
      %39 = dma.done [#allocation6], 64
    $region17: #{tpu_custom_call.1} parent=1 // pred_fallthru
      _
    // Predicated region
    $region18: #{tpu_custom_call.1} parent=1 // pred_check
      _
    $region19: #{tpu_custom_call.1} parent=1 // pred_check_branch
      %41 = sbr.rel (0) target = $region21
    $region20: #{tpu_custom_call.1} parent=1 // pred_region
      %42 = dma.done [#allocation9], 1024
    $region21: #{tpu_custom_call.1} parent=1 // pred_fallthru
      _
    %p44 = scmp.eq.s32.totalorder 0, 0
    // Predicated region
    $region22: #{tpu_custom_call.1} parent=1 // pred_check
      %p45 = pneg %p44
    $region23: #{tpu_custom_call.1} parent=1 // pred_check_branch
      %47 = sbr.rel (%p45) target = $region25
    $region24: #{tpu_custom_call.1} parent=1 // pred_region
      %48 = vst [vmem:[#allocation2] sm:$0xff] 0.0
    $region25: #{tpu_custom_call.1} parent=1 // pred_fallthru
      _
    %s49 = sadd.s32 0, 0
    %s50 = smul.u32 %s49, 128
    %s51 = sadd.s32 %s50, 0
    %s52 = sld [smem:[#allocation4 + %s51]]
    %p53 = scmp.ne.s32.totalorder %s52, 0
    // Predicated region
    $region26: #{tpu_custom_call.1} parent=1 // pred_check
      %p54 = pneg %p53
    $region27: #{tpu_custom_call.1} parent=1 // pred_check_branch
      %56 = sbr.rel (%p54) target = $region29
    $region28: #{tpu_custom_call.1} parent=1 // pred_region
      %v57 = vld [vmem:[#allocation2] sm:$0xff]
      %v58 = vld [vmem:[#allocation5] sm:$0xf]
      %v59 = vld [vmem:[#allocation8] sm:$0xf]
      %v60 = vld [vmem:[#allocation8 + $0x4] sm:$0xf]
      %v61 = vld [vmem:[#allocation8 + $0x8] sm:$0xf]
      %v62 = vld [vmem:[#allocation8 + $0xc] sm:$0xf]
      %v63 = vld [vmem:[#allocation8 + $0x10] sm:$0xf]
      %v64 = vld [vmem:[#allocation8 + $0x14] sm:$0xf]
      %v65 = vld [vmem:[#allocation8 + $0x18] sm:$0xf]
      %v66 = vld [vmem:[#allocation8 + $0x1c] sm:$0xf]
      %v67 = vld [vmem:[#allocation8 + $0x20] sm:$0xf]
      %v68 = vld [vmem:[#allocation8 + $0x24] sm:$0xf]
      %v69 = vld [vmem:[#allocation8 + $0x28] sm:$0xf]
      %v70 = vld [vmem:[#allocation8 + $0x2c] sm:$0xf]
      %v71 = vld [vmem:[#allocation8 + $0x30] sm:$0xf]
      %v72 = vld [vmem:[#allocation8 + $0x34] sm:$0xf]
      %v73 = vld [vmem:[#allocation8 + $0x38] sm:$0xf]
      %v74 = vld [vmem:[#allocation8 + $0x3c] sm:$0xf]
      %v91 = vunpack.c.l.b16 %v59
      %v92 = vunpack.c.l.b16 %v60
      %v93 = vunpack.c.l.b16 %v61
      %v94 = vunpack.c.l.b16 %v62
      %v95 = vunpack.c.l.b16 %v63
      %v96 = vunpack.c.l.b16 %v64
      %v97 = vunpack.c.l.b16 %v65
      %v98 = vunpack.c.l.b16 %v66
      %v99 = vunpack.c.l.b16 %v67
      %v100 = vunpack.c.l.b16 %v68
      %v101 = vunpack.c.l.b16 %v69
      %v102 = vunpack.c.l.b16 %v70
      %v103 = vunpack.c.l.b16 %v71
      %v104 = vunpack.c.l.b16 %v72
      %v105 = vunpack.c.l.b16 %v73
      %v106 = vunpack.c.l.b16 %v74
      %v107 = vpack.c.b16 %v92, %v91
      %v108 = vpack.c.b16 %v94, %v93
      %v109 = vpack.c.b16 %v96, %v95
      %v110 = vpack.c.b16 %v98, %v97
      %v111 = vpack.c.b16 %v100, %v99
      %v112 = vpack.c.b16 %v102, %v101
      %v113 = vpack.c.b16 %v104, %v103
      %v114 = vpack.c.b16 %v106, %v105
      %123 = vmatprep.subr.bf16.mxu0 0
      %124 = vmatpush1.bf16.msra.mxu0 %v107
      %125 = vmatprep.subr.bf16.mxu0 0
      %126 = vmatpush1.bf16.msra.mxu0 %v108
      %127 = vmatprep.subr.bf16.mxu0 0
      %128 = vmatpush1.bf16.msra.mxu0 %v109
      %129 = vmatprep.subr.bf16.mxu0 0
      %130 = vmatpush1.bf16.msra.mxu0 %v110
      %131 = vmatprep.subr.bf16.mxu0 0
      %132 = vmatpush1.bf16.msra.mxu0 %v111
      %133 = vmatprep.subr.bf16.mxu0 0
      %134 = vmatpush1.bf16.msra.mxu0 %v112
      %135 = vmatprep.subr.bf16.mxu0 0
      %136 = vmatpush1.bf16.msra.mxu0 %v113
      %137 = vmatprep.subr.bf16.mxu0 0
      %138 = vmatpush1.bf16.msra.mxu0 %v114
      %139 = vmatprep.subr.bf16.mxu0 0
      %140 = vmatpush1.bf16.msra.mxu0 0
      %141 = vmatprep.subr.bf16.mxu0 0
      %142 = vmatpush1.bf16.msra.mxu0 0
      %143 = vmatprep.subr.bf16.mxu0 0
      %144 = vmatpush1.bf16.msra.mxu0 0
      %145 = vmatprep.subr.bf16.mxu0 0
      %146 = vmatpush1.bf16.msra.mxu0 0
      %147 = vmatprep.subr.bf16.mxu0 0
      %148 = vmatpush1.bf16.msra.mxu0 0
      %149 = vmatprep.subr.bf16.mxu0 0
      %150 = vmatpush1.bf16.msra.mxu0 0
      %151 = vmatprep.subr.bf16.mxu0 0
      %152 = vmatpush1.bf16.msra.mxu0 0
      %153 = vmatprep.subr.bf16.mxu0 0
      %154 = vmatpush1.bf16.msra.mxu0 0
      %155 = vmatprep.mubr.bf16.mxu0 0
      %156 = vmatmul.mubr.bf16.gmra.mrb[0].mxu0 %v58
      %v157 = vpop.f32.mrb[0].mxu0
      %v158 = vadd.f32 0.0, %v157
      %v159 = vpop.f32.mrb[0].mxu0
      %v160 = vpop.f32.mrb[0].mxu0
      %v161 = vpop.f32.mrb[0].mxu0
      %162 = vdwg.mxu0
      %v163 = vadd.f32 %v57, %v158
      %164 = vst [vmem:[#allocation2] sm:$0xff] %v163
    $region29: #{tpu_custom_call.1} parent=1 // pred_fallthru
      _
    // Predicated region
    $region30: #{tpu_custom_call.1} parent=1 // pred_check
      %p165 = pneg %p44
    $region31: #{tpu_custom_call.1} parent=1 // pred_check_branch
      %167 = sbr.rel (%p165) target = $region33
    $region32: #{tpu_custom_call.1} parent=1 // pred_region
      %v168 = vld [vmem:[#allocation2] sm:$0xff]
      %v169 = vld [vmem:[%s3] sm:$0x1]
      %v171 = vlaneseq
      %v172 = vshrl.u32 %v171, 7
      %v173 = vsub.s32 0, %v172
      %v174 = vrot.slane %v169, %v173
      %v176 = vadd.f32 %v168, %v174
      %177 = vst [vmem:[#allocation10] sm:$0xff] %v176
    $region33: #{tpu_custom_call.1} parent=1 // pred_fallthru
      _
    // Predicated region
    $region34: #{tpu_custom_call.1} parent=1 // pred_check
      _
    $region35: #{tpu_custom_call.1} parent=1 // pred_check_branch
      %179 = sbr.rel (0) target = $region37
    $region36: #{tpu_custom_call.1} parent=1 // pred_region
      %s181 = ssub.s32 128, 128
      %182 = vsyncadd [#allocation7], %s181
      %s184 = sshll.u32 [#allocation10], 4
      %s185 = int_to_ptr.vmem [resolvable:$true] %s184
      %187 = dma.vmem_to_hbm [thread:$0]  %s185, 128, %s4, [#allocation7]
    $region37: #{tpu_custom_call.1} parent=1 // pred_fallthru
      _
    // Predicated region
    $region38: #{tpu_custom_call.1} parent=1 // pred_check
      _
    $region39: #{tpu_custom_call.1} parent=1 // pred_check_branch
      %189 = sbr.rel (0) target = $region41
    $region40: #{tpu_custom_call.1} parent=1 // pred_region
      %190 = dma.done [#allocation7], 128
    $region41: #{tpu_custom_call.1} parent=1 // pred_fallthru
      _
    %191 = vsyncpa [#allocation6], 1
    %192 = vsyncpa [#allocation9], 1
    %193 = vsyncpa [#allocation7], 1

</llo_original>
